<compile_context>
chip_gen: v7x
topology: tpu7x:2x2x1
jax: 0.10.0
libtpu: 0.0.40
codegen_flags: <defaults>
</compile_context>

<pallas_src>
import functools

import jax
import jax.numpy as jnp
from jax.experimental import pallas as pl
from jax.experimental.pallas import tpu as pltpu

_LANES = 128
_SUBLANES = 8


def _loss_attenuation_kernel(combo_ref, tgt_ref, out_ref, *, block_rows, loss_type):
    # Zero the resident output block at the start of each split's sweep.
    @pl.when(pl.program_id(1) == 0)
    def _():
        out_ref[...] = jnp.zeros_like(out_ref)

    m = combo_ref[0]              # (block_rows, 128) predicted mean
    lv = combo_ref[1]             # (block_rows, 128) log-variance
    t = tgt_ref[...]              # (block_rows, 128) target

    if loss_type == "mse":
        per_elem = (m - t) * (m - t)
    elif loss_type == "bce":
        # torch.nn.BCELoss clamps the log terms at -100 to avoid -inf/NaN.
        log_m = jnp.maximum(jnp.log(m), -100.0)
        log_1m = jnp.maximum(jnp.log1p(-m), -100.0)
        per_elem = -(t * log_m + (1.0 - t) * log_1m)
    else:
        raise ValueError(f"unsupported loss_type: {loss_type}")

    inv_var = jnp.exp(-lv)                       # fold the divide into the exp
    loss = 0.5 * (per_elem * inv_var + lv)       # zero for zero-padded elements

    # Fold the (block_rows, 128) tile onto the resident (8, 128) output block:
    # sublane-tile-aligned reshape + leading-axis sum lower to pure VPU adds.
    out_ref[...] += jnp.sum(
        loss.reshape(block_rows // _SUBLANES, _SUBLANES, _LANES), axis=0)


def loss_attenuation(output: jax.Array, target: jax.Array,
                     loss_type: str = "mse",
                     max_block_rows: int = 1024) -> jax.Array:
    """output: [N, 2] (mean, log_variance), target: [N, 1] or [N]. Scalar f32."""
    n = output.shape[0]
    assert output.shape == (n, 2)
    assert target.shape in ((n, 1), (n,))
    assert max_block_rows >= _SUBLANES and max_block_rows % _SUBLANES == 0

    rows = pl.cdiv(n, _LANES)
    block_rows = min(max_block_rows, pl.cdiv(rows, _SUBLANES) * _SUBLANES)
    row_blocks = pl.cdiv(rows, block_rows)
    splits = 2 if row_blocks >= 2 else 1      # 2 partial sums -> both v7x TCs
    steps = pl.cdiv(row_blocks, splits)
    padded_rows = splits * steps * block_rows
    padded_n = padded_rows * _LANES

    # Glue (layout plumbing, not compute): one transpose fuses mean/log_var
    # into a single contiguous slab; zero-pad both slabs up to the block grid.
    # Padded (0, 0, 0) elements contribute exactly zero loss for MSE and BCE.
    combo = jnp.pad(output.astype(jnp.float32).T, ((0, 0), (0, padded_n - n)))
    combo = combo.reshape(2, padded_rows, _LANES)
    tgt = jnp.pad(target.reshape(n).astype(jnp.float32), (0, padded_n - n))
    tgt = tgt.reshape(padded_rows, _LANES)

    kernel = functools.partial(_loss_attenuation_kernel,
                               block_rows=block_rows, loss_type=loss_type)

    partials = pl.pallas_call(
        kernel,
        out_shape=jax.ShapeDtypeStruct((splits * _SUBLANES, _LANES), jnp.float32),
        grid_spec=pltpu.PrefetchScalarGridSpec(
            num_scalar_prefetch=0,
            grid=(splits, steps),
            in_specs=[
                pl.BlockSpec((2, block_rows, _LANES),
                             lambda c, i: (0, c * steps + i, 0)),
                pl.BlockSpec((block_rows, _LANES),
                             lambda c, i: (c * steps + i, 0)),
            ],
            # Same block index across the sequential axis -> resident accumulator.
            out_specs=pl.BlockSpec((_SUBLANES, _LANES), lambda c, i: (c, 0)),
        ),
        compiler_params=pltpu.CompilerParams(
            dimension_semantics=("parallel", "arbitrary")),
    )(combo, tgt)

    # Padded elements summed to exactly zero, so the divisor is the true N.
    return jnp.sum(partials) / jnp.float32(n)


def _reference(output, target, loss_type="mse"):
    mean, log_var = output[:, 0], output[:, 1]
    variance = jnp.exp(log_var)
    t = target.reshape(-1)
    if loss_type == "mse":
        per_elem = (mean - t) ** 2
    else:
        per_elem = -(t * jnp.log(mean) + (1.0 - t) * jnp.log(1.0 - mean))
    return jnp.mean(0.5 * (per_elem / variance + log_var))


if __name__ == "__main__":
    key = jax.random.PRNGKey(0)
    k1, k2, k3, k4, k5, k6 = jax.random.split(key, 6)

    # Case 1: MSE, N not a multiple of 128 (exercises padding / zero-tail).
    n1 = 300
    out1 = jnp.concatenate(
        [jax.random.normal(k1, (n1, 1), jnp.float32),
         0.1 * jax.random.normal(k2, (n1, 1), jnp.float32)], axis=1)
    tgt1 = jax.random.normal(k3, (n1, 1), jnp.float32)
    res1 = jax.block_until_ready(loss_attenuation(out1, tgt1, "mse"))
    ref1 = _reference(out1, tgt1, "mse")
    assert jnp.allclose(res1, ref1, rtol=1e-5, atol=1e-5), (res1, ref1)

    # Case 2: BCE path (means squashed into (0,1), binary targets).
    n2 = 256
    mean2 = jax.nn.sigmoid(jax.random.normal(k4, (n2, 1), jnp.float32))
    logv2 = 0.1 * jax.random.normal(k5, (n2, 1), jnp.float32)
    out2 = jnp.concatenate([mean2, logv2], axis=1)
    tgt2 = jax.random.bernoulli(k6, 0.5, (n2, 1)).astype(jnp.float32)
    res2 = jax.block_until_ready(loss_attenuation(out2, tgt2, "bce"))
    ref2 = _reference(out2, tgt2, "bce")
    assert jnp.allclose(res2, ref2, rtol=1e-5, atol=1e-5), (res2, ref2)

    # Case 3: multi-step accumulation + 2-way parallel split (small block size
    # forced so the grid has several steps while the shapes stay small).
    n3 = 4096
    k7, k8, k9 = jax.random.split(k1, 3)
    out3 = jnp.concatenate(
        [jax.random.normal(k7, (n3, 1), jnp.float32),
         0.1 * jax.random.normal(k8, (n3, 1), jnp.float32)], axis=1)
    tgt3 = jax.random.normal(k9, (n3, 1), jnp.float32)
    res3 = jax.block_until_ready(
        loss_attenuation(out3, tgt3, "mse", max_block_rows=8))
    ref3 = _reference(out3, tgt3, "mse")
    assert jnp.allclose(res3, ref3, rtol=1e-5, atol=1e-5), (res3, ref3)

    print("KERNEL_OK")
</pallas_src>

<mosaic_0001>
module attributes {stable_mosaic.version = 11 : i64} {
  func.func @_loss_attenuation_kernel(%arg0: i32, %arg1: i32, %arg2: memref<2x8x128xf32, #tpu.memory_space<vmem>>, %arg3: memref<8x128xf32, #tpu.memory_space<vmem>>, %arg4: memref<8x128xf32, #tpu.memory_space<vmem>>) attributes {dimension_semantics = [#tpu.dimension_semantics<parallel>, #tpu.dimension_semantics<arbitrary>], iteration_bounds = array<i64: 1, 1>, scalar_prefetch = 0 : i64, scratch_operands = 0 : i64, tpu.core_type = #tpu.core_type<tc>, window_params = [{transform_indices = @transform_0, window_bounds = array<i64: 2, 8, 128>}, {transform_indices = @transform_1, window_bounds = array<i64: 8, 128>}, {transform_indices = @transform_2, window_bounds = array<i64: 8, 128>}]} {
    %c0_i32 = arith.constant 0 : i32
    %0 = arith.cmpi eq, %arg1, %c0_i32 : i32
    %1 = arith.extui %0 : i1 to i32
    %c0_i32_0 = arith.constant 0 : i32
    %2 = arith.cmpi ne, %1, %c0_i32_0 : i32
    scf.if %2 {
      %cst_13 = arith.constant 0.000000e+00 : f32
      %23 = vector.broadcast %cst_13 : f32 to vector<8x128xf32>
      %c0_14 = arith.constant 0 : index
      %c0_15 = arith.constant 0 : index
      %24 = vector.load %arg4[%c0_14, %c0_15] : memref<8x128xf32, #tpu.memory_space<vmem>>, vector<8x128xf32>
      tpu.vector_store %arg4[%c0_14, %c0_15], %23 {strides = array<i32>} : memref<8x128xf32, #tpu.memory_space<vmem>>, vector<8x128xf32>,
    } else {
    }
    %c0 = arith.constant 0 : index
    %c0_1 = arith.constant 0 : index
    %c0_2 = arith.constant 0 : index
    %3 = vector.load %arg2[%c0, %c0_1, %c0_2] : memref<2x8x128xf32, #tpu.memory_space<vmem>>, vector<1x8x128xf32>
    %4 = vector.shape_cast %3 : vector<1x8x128xf32> to vector<8x128xf32>
    %c1 = arith.constant 1 : index
    %c0_3 = arith.constant 0 : index
    %c0_4 = arith.constant 0 : index
    %5 = vector.load %arg2[%c1, %c0_3, %c0_4] : memref<2x8x128xf32, #tpu.memory_space<vmem>>, vector<1x8x128xf32>
    %6 = vector.shape_cast %5 : vector<1x8x128xf32> to vector<8x128xf32>
    %c0_5 = arith.constant 0 : index
    %c0_6 = arith.constant 0 : index
    %7 = vector.load %arg3[%c0_5, %c0_6] : memref<8x128xf32, #tpu.memory_space<vmem>>, vector<8x128xf32>
    %8 = arith.subf %4, %7 : vector<8x128xf32>
    %9 = arith.subf %4, %7 : vector<8x128xf32>
    %10 = arith.mulf %8, %9 : vector<8x128xf32>
    %cst = arith.constant 0.000000e+00 : f32
    %11 = vector.broadcast %cst : f32 to vector<8x128xf32>
    %12 = arith.subf %11, %6 : vector<8x128xf32>
    %13 = math.exp %12 : vector<8x128xf32>
    %14 = arith.mulf %10, %13 : vector<8x128xf32>
    %15 = arith.addf %14, %6 : vector<8x128xf32>
    %cst_7 = arith.constant 5.000000e-01 : f32
    %16 = vector.broadcast %cst_7 : f32 to vector<8x128xf32>
    %17 = arith.mulf %16, %15 : vector<8x128xf32>
    %c0_8 = arith.constant 0 : index
    %c0_9 = arith.constant 0 : index
    %18 = vector.load %arg4[%c0_8, %c0_9] : memref<8x128xf32, #tpu.memory_space<vmem>>, vector<8x128xf32>
    %19 = vector.shape_cast %17 : vector<8x128xf32> to vector<1x8x128xf32>
    %cst_10 = arith.constant dense<0.000000e+00> : vector<8x128xf32>
    %20 = vector.multi_reduction <add>, %19, %cst_10 [0] : vector<1x8x128xf32> to vector<8x128xf32>
    %21 = arith.addf %18, %20 : vector<8x128xf32>
    %c0_11 = arith.constant 0 : index
    %c0_12 = arith.constant 0 : index
    %22 = vector.load %arg4[%c0_11, %c0_12] : memref<8x128xf32, #tpu.memory_space<vmem>>, vector<8x128xf32>
    tpu.vector_store %arg4[%c0_11, %c0_12], %21 {strides = array<i32>} : memref<8x128xf32, #tpu.memory_space<vmem>>, vector<8x128xf32>,
    return
  }
  func.func @transform_0(%arg0: i32, %arg1: i32) -> (i32, i32, i32) {
    %c1_i32 = arith.constant 1 : i32
    %0 = arith.muli %arg0, %c1_i32 : i32
    %1 = arith.addi %0, %arg1 : i32
    %c0_i32 = arith.constant 0 : i32
    %c0_i32_0 = arith.constant 0 : i32
    %c0_i32_1 = arith.constant 0 : i32
    return %c0_i32, %1, %c0_i32_0 : i32, i32, i32
  }
  func.func @transform_1(%arg0: i32, %arg1: i32) -> (i32, i32) {
    %c1_i32 = arith.constant 1 : i32
    %0 = arith.muli %arg0, %c1_i32 : i32
    %1 = arith.addi %0, %arg1 : i32
    %c0_i32 = arith.constant 0 : i32
    %c0_i32_0 = arith.constant 0 : i32
    return %1, %c0_i32 : i32, i32
  }
  func.func @transform_2(%arg0: i32, %arg1: i32) -> (i32, i32) {
    %c0_i32 = arith.constant 0 : i32
    %c0_i32_0 = arith.constant 0 : i32
    return %arg0, %c0_i32 : i32, i32
  }
}

</mosaic_0001>

<llo_original>
// kernel: tpu_custom_call.1
$region0: #{tpu_custom_call.1}
  #allocation0 [shape = 'u32[]', space=smem, size = 0x4, offset = 0x4, fixed_abs, tag = 'smem constant byte address 0x4 - core index']
  #allocation1 [shape = 'u32[144,128]{1,0:T(1,128)}', space=vmem, size = 0x12000, scoped, tag = 'internal scratch']
  %s0 = inlined_call_operand.hbm [shape: f32[2,8,128], index: 0, kind: input, shape index: {}]
  %s1 = inlined_call_operand.hbm [shape: f32[8,128], index: 1, kind: input, shape index: {}]
  %s2 = inlined_call_operand.hbm [shape: f32[8,128], index: 2, kind: output, shape index: {}]
  %s3 = sld [smem:[#allocation0]]
  $region30: #{tpu_custom_call.1} parent=0
    _
  %s5 = ssub.s32 1, %s3
  %s6 = scalar_select 0, %s5, %s3
  $region1: #{tpu_custom_call.1} parent=0
    #allocation2 [shape = 'u8[8192]{0}', space=vmem, size = 0x2000, scoped, tag = 'input window, operand 0, single buffered']
    #allocation3 [shape = 's32[1]{0}', space=sflag, size = 0x4, scoped, tag = 'scoped memory for tpu_custom_call.1']
    #allocation4 [shape = 's32[1]{0}', space=sflag, size = 0x4, scoped, tag = 'scoped memory for tpu_custom_call.1']
    #allocation5 [shape = 'u8[4096]{0}', space=vmem, size = 0x1000, scoped, tag = 'input window, operand 1, single buffered']
    #allocation6 [shape = 's32[1]{0}', space=sflag, size = 0x4, scoped, tag = 'scoped memory for tpu_custom_call.1']
    #allocation7 [shape = 'u8[4096]{0}', space=vmem, size = 0x1000, scoped, tag = 'output window, operand 0, single buffered']
    %7 = vsyncpa [#allocation3], 0
    %8 = vsyncpa [#allocation6], 0
    %9 = vsyncpa [#allocation4], 0
    // Predicated region
    $region2: #{tpu_custom_call.1} parent=1 // pred_check
      _
    $region3: #{tpu_custom_call.1} parent=1 // pred_check_branch
      %11 = sbr.rel (0) target = $region5
    $region4: #{tpu_custom_call.1} parent=1 // pred_region
      %s12 = sadd.s32 0, 0
      %s14 = ssub.s32 256, 256
      %15 = vsyncadd [#allocation3], %s14
      %s16 = smul.addr %s12, 128
      %s17 = scalar_lea.hbm %s0, %s16
      %s18 = sshll.u32 [#allocation2], 4
      %s19 = int_to_ptr.vmem [resolvable:$true] %s18
      %24 = dma.hbm_to_vmem [thread:$0]  %s17, 256, %s19, [#allocation3], 128, 128, 8
    $region5: #{tpu_custom_call.1} parent=1 // pred_fallthru
      _
    // Predicated region
    $region6: #{tpu_custom_call.1} parent=1 // pred_check
      _
    $region7: #{tpu_custom_call.1} parent=1 // pred_check_branch
      %26 = sbr.rel (0) target = $region9
    $region8: #{tpu_custom_call.1} parent=1 // pred_region
      %s27 = sadd.s32 0, 0
      %s29 = ssub.s32 128, 128
      %30 = vsyncadd [#allocation6], %s29
      %s31 = smul.addr %s27, 128
      %s32 = scalar_lea.hbm %s1, %s31
      %s34 = sshll.u32 [#allocation5], 4
      %s35 = int_to_ptr.vmem [resolvable:$true] %s34
      %37 = dma.hbm_to_vmem [thread:$0]  %s32, 128, %s35, [#allocation6]
    $region9: #{tpu_custom_call.1} parent=1 // pred_fallthru
      _
    // Predicated region
    $region10: #{tpu_custom_call.1} parent=1 // pred_check
      _
    $region11: #{tpu_custom_call.1} parent=1 // pred_check_branch
      %39 = sbr.rel (0) target = $region13
    $region12: #{tpu_custom_call.1} parent=1 // pred_region
      %40 = dma.done [#allocation3], 256
    $region13: #{tpu_custom_call.1} parent=1 // pred_fallthru
      _
    // Predicated region
    $region14: #{tpu_custom_call.1} parent=1 // pred_check
      _
    $region15: #{tpu_custom_call.1} parent=1 // pred_check_branch
      %42 = sbr.rel (0) target = $region17
    $region16: #{tpu_custom_call.1} parent=1 // pred_region
      %43 = dma.done [#allocation6], 128
    $region17: #{tpu_custom_call.1} parent=1 // pred_fallthru
      _
    %s44 = sadd.s32 0, 0
    %s45 = sadd.s32 0, 0
    %p46 = scmp.eq.s32.totalorder 0, 0
    // Predicated region
    $region18: #{tpu_custom_call.1} parent=1 // pred_check
      %p47 = pneg %p46
    $region19: #{tpu_custom_call.1} parent=1 // pred_check_branch
      %49 = sbr.rel (%p47) target = $region21
    $region20: #{tpu_custom_call.1} parent=1 // pred_region
      %50 = vst [vmem:[#allocation7] sm:$0xff] 0.0
    $region21: #{tpu_custom_call.1} parent=1 // pred_fallthru
      _
    %v51 = vld [vmem:[#allocation2] sm:$0xff]
    %s52 = scalar_lea.vmem [#allocation2], 8
    %v53 = vld [vmem:[%s52] sm:$0xff]
    %v54 = vld [vmem:[#allocation5] sm:$0xff]
    %v55 = vsub.f32 %v51, %v54
    %v56 = vmul.f32 %v55, %v55
    %v57 = vsub.f32 0.0, %v53
    %v58 = vmul.f32 %v57, 1.442695
    %v59 = vpow.pop %v58
    %v60 = vmul.f32 %v56, %v59
    %v61 = vadd.f32 %v60, %v53
    %v62 = vmul.f32 %v61, 0.5
    %v63 = vld [vmem:[#allocation7] sm:$0xff]
    %v64 = vadd.f32 %v62, 0.0
    %v65 = vadd.f32 %v63, %v64
    %66 = vst [vmem:[#allocation7] sm:$0xff] %v65
    // Predicated region
    $region22: #{tpu_custom_call.1} parent=1 // pred_check
      _
    $region23: #{tpu_custom_call.1} parent=1 // pred_check_branch
      %68 = sbr.rel (0) target = $region25
    $region24: #{tpu_custom_call.1} parent=1 // pred_region
      %s70 = ssub.s32 128, 128
      %71 = vsyncadd [#allocation4], %s70
      %s73 = sshll.u32 [#allocation7], 4
      %s74 = int_to_ptr.vmem [resolvable:$true] %s73
      %76 = dma.vmem_to_hbm [thread:$0]  %s74, 128, %s2, [#allocation4]
    $region25: #{tpu_custom_call.1} parent=1 // pred_fallthru
      _
    // Predicated region
    $region26: #{tpu_custom_call.1} parent=1 // pred_check
      _
    $region27: #{tpu_custom_call.1} parent=1 // pred_check_branch
      %78 = sbr.rel (0) target = $region29
    $region28: #{tpu_custom_call.1} parent=1 // pred_region
      %79 = dma.done [#allocation4], 128
    $region29: #{tpu_custom_call.1} parent=1 // pred_fallthru
      _
    %80 = vsyncpa [#allocation3], 1
    %81 = vsyncpa [#allocation6], 1
    %82 = vsyncpa [#allocation4], 1

</llo_original>
